<compile_context>
chip_gen: v7x
topology: tpu7x:2x2x1
jax: 0.10.0
libtpu: 0.0.40
codegen_flags: <defaults>
</compile_context>

<pallas_src>
import jax
import jax.numpy as jnp
from jax.experimental import pallas as pl
from jax.experimental.pallas import tpu as pltpu


def cat_relu6_kernel(x_ref, o_ref):
    # x_ref: (br, L)    o_ref: (br, 2L)
    L = x_ref.shape[1]
    y = jnp.clip(x_ref[...], 0.0, 6.0)   # native dtype, no widening round trip
    # Two lane-offset stores realize the channel concat in the lane dimension.
    o_ref[:, :L] = y
    o_ref[:, L:] = y


def cat_relu6(x, *, vmem_budget_bytes=24 << 20):
    B, C, W = x.shape
    L = C * W
    itemsize = jnp.dtype(x.dtype).itemsize
    x2 = x.reshape(B, L)  # free contiguous reshape (lane-dense last dim)

    # --- choose row-block size from a VMEM budget -------------------------
    # Pipelined footprint ~= 2 (double buffer) * (in: br*L + out: br*2L) * size
    #                      = 6 * br * L * itemsize
    sub = max(8, 32 // itemsize)              # sublane multiple (f32:8, bf16:16)
    per_row = 6 * L * itemsize
    br = (vmem_budget_bytes // per_row) // sub * sub
    br = max(br, sub)
    if B >= 2 * sub:
        # Keep at least 2 grid steps so both v7x TensorCores get work.
        br = min(br, max(sub, (pl.cdiv(B, 2) // sub) * sub))
    if br >= B:
        br = B                                # single full-extent block
    grid = (pl.cdiv(B, br),)

    footprint = 6 * br * L * itemsize
    vmem_limit = int(max(32 << 20, footprint + footprint // 4))

    out2 = pl.pallas_call(
        cat_relu6_kernel,
        out_shape=jax.ShapeDtypeStruct((B, 2 * L), x.dtype),
        grid_spec=pltpu.PrefetchScalarGridSpec(
            num_scalar_prefetch=0,
            grid=grid,
            in_specs=[pl.BlockSpec((br, L), lambda i: (i, 0))],
            out_specs=pl.BlockSpec((br, 2 * L), lambda i: (i, 0)),
        ),
        compiler_params=pltpu.CompilerParams(
            dimension_semantics=("parallel",),
            vmem_limit_bytes=vmem_limit,
        ),
        cost_estimate=pl.CostEstimate(
            flops=2 * B * L,
            transcendentals=0,
            bytes_accessed=3 * B * L * itemsize,
        ),
    )(x2)

    # Free contiguous reshape: (B, 2L) -> (B, 2C, W) == cat((x, x), dim=1)
    return out2.reshape(B, 2 * C, W)


if __name__ == "__main__":
    key = jax.random.PRNGKey(0)
    x = jax.random.normal(key, (2, 3, 4), dtype=jnp.float32)

    out = jax.block_until_ready(cat_relu6(x))

    # Reference (semantics of the PyTorch module).
    ref = jnp.clip(jnp.concatenate((x, x), axis=1), 0.0, 6.0)
    assert out.shape == (2, 6, 4), out.shape
    assert jnp.allclose(out, ref, atol=1e-6), "mismatch vs reference"

    print("KERNEL_OK")
</pallas_src>

<mosaic_0001>
module attributes {stable_mosaic.version = 11 : i64} {
  func.func @cat_relu6_kernel(%arg0: i32, %arg1: memref<2x12xf32, #tpu.memory_space<vmem>>, %arg2: memref<2x24xf32, #tpu.memory_space<vmem>>) attributes {dimension_semantics = [#tpu.dimension_semantics<parallel>], iteration_bounds = array<i64: 1>, scalar_prefetch = 0 : i64, scratch_operands = 0 : i64, tpu.core_type = #tpu.core_type<tc>, window_params = [{transform_indices = @transform_0, window_bounds = array<i64: 2, 12>}, {transform_indices = @transform_1, window_bounds = array<i64: 2, 24>}]} {
    %c0 = arith.constant 0 : index
    %c0_0 = arith.constant 0 : index
    %0 = vector.load %arg1[%c0, %c0_0] : memref<2x12xf32, #tpu.memory_space<vmem>>, vector<2x12xf32>
    %cst = arith.constant 0.000000e+00 : f32
    %cst_1 = arith.constant 6.000000e+00 : f32
    %1 = vector.broadcast %cst : f32 to vector<2x12xf32>
    %2 = arith.maximumf %1, %0 : vector<2x12xf32>
    %3 = vector.broadcast %cst_1 : f32 to vector<2x12xf32>
    %4 = arith.minimumf %3, %2 : vector<2x12xf32>
    %c0_2 = arith.constant 0 : index
    %c0_3 = arith.constant 0 : index
    %5 = vector.load %arg2[%c0_2, %c0_3] : memref<2x24xf32, #tpu.memory_space<vmem>>, vector<2x12xf32>
    tpu.vector_store %arg2[%c0_2, %c0_3], %4 {strides = array<i32>} : memref<2x24xf32, #tpu.memory_space<vmem>>, vector<2x12xf32>,
    %c0_4 = arith.constant 0 : index
    %c12 = arith.constant 12 : index
    %6 = vector.load %arg2[%c0_4, %c12] : memref<2x24xf32, #tpu.memory_space<vmem>>, vector<2x12xf32>
    tpu.vector_store %arg2[%c0_4, %c12], %4 {strides = array<i32>} : memref<2x24xf32, #tpu.memory_space<vmem>>, vector<2x12xf32>,
    return
  }
  func.func @transform_0(%arg0: i32) -> (i32, i32) {
    %c0_i32 = arith.constant 0 : i32
    %c0_i32_0 = arith.constant 0 : i32
    return %arg0, %c0_i32 : i32, i32
  }
  func.func @transform_1(%arg0: i32) -> (i32, i32) {
    %c0_i32 = arith.constant 0 : i32
    %c0_i32_0 = arith.constant 0 : i32
    return %arg0, %c0_i32 : i32, i32
  }
}

</mosaic_0001>

<llo_original>
// kernel: tpu_custom_call.1
$region0: #{tpu_custom_call.1}
  #allocation0 [shape = 'u32[]', space=smem, size = 0x4, offset = 0x4, fixed_abs, tag = 'smem constant byte address 0x4 - core index']
  #allocation1 [shape = 'u32[144,128]{1,0:T(1,128)}', space=vmem, size = 0x12000, scoped, tag = 'internal scratch']
  %s0 = inlined_call_operand.hbm [shape: f32[2,12], index: 0, kind: input, shape index: {}]
  %s1 = inlined_call_operand.hbm [shape: f32[2,24], index: 1, kind: output, shape index: {}]
  %s2 = sld [smem:[#allocation0]]
  $region18: #{tpu_custom_call.1} parent=0
    _
  %s4 = ssub.s32 1, %s2
  %s5 = scalar_select 0, %s4, %s2
  $region1: #{tpu_custom_call.1} parent=0
    #allocation2 [shape = 'u8[1024]{0}', space=vmem, size = 0x400, scoped, tag = 'input window, operand 0, single buffered']
    #allocation3 [shape = 's32[1]{0}', space=sflag, size = 0x4, scoped, tag = 'scoped memory for tpu_custom_call.1']
    #allocation4 [shape = 's32[1]{0}', space=sflag, size = 0x4, scoped, tag = 'scoped memory for tpu_custom_call.1']
    #allocation5 [shape = 'u8[1024]{0}', space=vmem, size = 0x400, scoped, tag = 'output window, operand 0, single buffered']
    %6 = vsyncpa [#allocation3], 0
    %7 = vsyncpa [#allocation4], 0
    // Predicated region
    $region2: #{tpu_custom_call.1} parent=1 // pred_check
      _
    $region3: #{tpu_custom_call.1} parent=1 // pred_check_branch
      %9 = sbr.rel (0) target = $region5
    $region4: #{tpu_custom_call.1} parent=1 // pred_region
      %s11 = ssub.s32 32, 32
      %12 = vsyncadd [#allocation3], %s11
      %s14 = sshll.u32 [#allocation2], 4
      %s15 = int_to_ptr.vmem [resolvable:$true] %s14
      %17 = dma.hbm_to_vmem [thread:$0]  %s0, 32, %s15, [#allocation3]
    $region5: #{tpu_custom_call.1} parent=1 // pred_fallthru
      _
    // Predicated region
    $region6: #{tpu_custom_call.1} parent=1 // pred_check
      _
    $region7: #{tpu_custom_call.1} parent=1 // pred_check_branch
      %19 = sbr.rel (0) target = $region9
    $region8: #{tpu_custom_call.1} parent=1 // pred_region
      %20 = dma.done [#allocation3], 32
    $region9: #{tpu_custom_call.1} parent=1 // pred_fallthru
      _
    %v21 = vld [vmem:[#allocation2] sm:$0x3]
    %v22 = vmax.f32 %v21, 0.0
    %v23 = vmin.f32 %v22, 6.0
    %vm24 = vcmask 91136
    %25 = vst.msk [vmem:[#allocation5] sm:$0x3] %vm24, %v23
    %27 = vrot.lane.b32.xlu0 %v23, 12
    %v28 = vpop.permute.xlu0 %27
    %vm30 = vcmask 189536
    %31 = vst.msk [vmem:[#allocation5] sm:$0x3] %vm30, %v28
    // Predicated region
    $region10: #{tpu_custom_call.1} parent=1 // pred_check
      _
    $region11: #{tpu_custom_call.1} parent=1 // pred_check_branch
      %33 = sbr.rel (0) target = $region13
    $region12: #{tpu_custom_call.1} parent=1 // pred_region
      %s35 = ssub.s32 32, 32
      %36 = vsyncadd [#allocation4], %s35
      %s38 = sshll.u32 [#allocation5], 4
      %s39 = int_to_ptr.vmem [resolvable:$true] %s38
      %41 = dma.vmem_to_hbm [thread:$0]  %s39, 32, %s1, [#allocation4]
    $region13: #{tpu_custom_call.1} parent=1 // pred_fallthru
      _
    // Predicated region
    $region14: #{tpu_custom_call.1} parent=1 // pred_check
      _
    $region15: #{tpu_custom_call.1} parent=1 // pred_check_branch
      %43 = sbr.rel (0) target = $region17
    $region16: #{tpu_custom_call.1} parent=1 // pred_region
      %44 = dma.done [#allocation4], 32
    $region17: #{tpu_custom_call.1} parent=1 // pred_fallthru
      _
    %45 = vsyncpa [#allocation3], 1
    %46 = vsyncpa [#allocation4], 1

</llo_original>
